<compile_context>
chip_gen: v5e
topology: v5e:2x2
jax: 0.10.0
libtpu: 0.0.40
codegen_flags: <defaults>
</compile_context>

<pallas_src>
import jax
import jax.numpy as jnp
from jax import lax
from jax.experimental import pallas as pl
from jax.experimental.pallas import tpu as pltpu


def partial_fc_kernel(x_ref, w_ref, o_ref):
    """Grid = (class_tiles, batch_tiles); class outer, batch inner.

    x_ref : (tm, E)  features tile (resident when tm == B)
    w_ref : (tn, E)  raw weight tile
    o_ref : (tm, tn) logits tile
    """
    # Row-wise L2 normalization of the weight tile, in registers.
    w = w_ref[...]
    w32 = w.astype(jnp.float32)
    ssq = jnp.sum(w32 * w32, axis=-1, keepdims=True)      # (tn, 1) f32
    # max(norm, 1e-12) in F.normalize  <=>  rsqrt(max(ssq, 1e-24)) (EUP).
    inv = lax.rsqrt(jnp.maximum(ssq, 1e-24))
    wn = (w32 * inv).astype(w.dtype)                       # keep MXU dtype

    # logits tile = x @ wn.T, expressed as a (last, last) contraction so no
    # transpose is materialized; the MXU accumulates in f32.
    acc = lax.dot_general(
        x_ref[...],
        wn,
        dimension_numbers=(((1,), (1,)), ((), ())),
        preferred_element_type=jnp.float32,
    )
    o_ref[...] = acc.astype(o_ref.dtype)


def _vmem_budget_bytes():
    """Generation-aware VMEM budget with headroom for Mosaic scratch."""
    cap = None
    try:
        cap = getattr(pltpu.get_tpu_info(), "vmem_capacity_bytes", None)
    except Exception:
        cap = None
    if not cap:
        cap = 64 << 20  # conservative (v7x per-TC) if the query is unavailable
    # 3/4 of physical, never more than 100 MiB: ~96 MiB on 128-MiB parts
    # (v5e / v6e), ~48 MiB on 64-MiB parts (v7x).
    return int(min(cap * 3 // 4, 100 << 20))


def _choose_tile(total, cap, align):
    """Largest multiple of `align` dividing `total`, no larger than `cap`.
    Falls back to the full extent (always a legal block size)."""
    if total <= cap:
        return total
    t = (min(cap, total) // align) * align
    while t >= align:
        if total % t == 0:
            return t
        t -= align
    return total


def _choose_lane_tile(total, cap):
    """Lane-dense class tile: prefer multiples of 256 (MXU N on v6e/v7x),
    fall back to multiples of 128, then to the full extent."""
    if total <= cap:
        return total
    for align in (256, 128):
        t = (min(cap, total) // align) * align
        while t >= align:
            if total % t == 0:
                return t
            t -= align
    return total


def partial_fc_forward(features, weight, *, tm=None, tn=None,
                       out_dtype=jnp.float32):
    """features: (B, E), weight: (C, E) -> logits (B, C) in `out_dtype`.

    features/weight may be float32 or bfloat16; the row sum-of-squares and the
    matmul accumulation are always float32.
    """
    B, E = features.shape
    C, E2 = weight.shape
    assert E == E2, "embedding dims must match"

    itm_x = jnp.dtype(features.dtype).itemsize
    itm_w = jnp.dtype(weight.dtype).itemsize
    itm_o = jnp.dtype(out_dtype).itemsize

    budget = _vmem_budget_bytes()
    headroom = 2 << 20

    # Batch tile: make the features block fully resident when it fits
    # (constant index map -> fetched once); otherwise tile with dtype-packed
    # sublane alignment (8 rows f32, 16 rows bf16).
    if tm is None:
        if 2 * B * E * itm_x <= budget // 2:
            tm = B
        else:
            align_m = 8 * max(1, 4 // itm_x)
            tm = _choose_tile(B, 1024, align_m)
    assert B % tm == 0

    # Class tile: largest lane-dense divisor of C whose double-buffered
    # weight + output tiles fit next to the resident features.
    if tn is None:
        avail = budget - headroom - 2 * tm * E * itm_x
        denom = 2 * (E * itm_w + tm * itm_o)
        tn_cap = max(avail // denom, 128)
        tn = _choose_lane_tile(C, min(tn_cap, 2048))
    assert C % tn == 0

    # HBM traffic under this tiling: weight read once; features read once when
    # resident (tm == B), otherwise once per class tile; output written once.
    feat_reads = 1 if tm == B else (C // tn)
    cost = pl.CostEstimate(
        flops=2 * B * C * E + 3 * C * E * (B // tm),
        transcendentals=C * (B // tm),   # one rsqrt per class row (per batch tile)
        bytes_accessed=(C * E * itm_w
                        + feat_reads * B * E * itm_x
                        + B * C * itm_o),
    )

    vmem_needed = (2 * tm * E * itm_x          # features (counted double-buffered)
                   + 2 * tn * E * itm_w        # weight double buffer
                   + 2 * tm * tn * itm_o       # output double buffer
                   + headroom)
    vmem_limit = int(min(max(vmem_needed, 32 << 20), budget))

    return pl.pallas_call(
        partial_fc_kernel,
        out_shape=jax.ShapeDtypeStruct((B, C), out_dtype),
        grid_spec=pltpu.PrefetchScalarGridSpec(
            num_scalar_prefetch=0,
            # Class axis OUTER (dominant weight stream), batch axis INNER
            # (extent 1 when tm == B, so the features block index is constant
            # and the block is fetched from HBM only once).
            grid=(C // tn, B // tm),
            in_specs=[
                pl.BlockSpec((tm, E), lambda j, i: (i, 0)),   # features
                pl.BlockSpec((tn, E), lambda j, i: (j, 0)),   # weight
            ],
            out_specs=pl.BlockSpec((tm, tn), lambda j, i: (i, j)),
        ),
        compiler_params=pltpu.CompilerParams(
            # No cross-iteration state -> both axes parallel (lets v7x shard
            # the class axis across its two TensorCores).
            dimension_semantics=("parallel", "parallel"),
            vmem_limit_bytes=vmem_limit,
        ),
        cost_estimate=cost,
    )(features, weight)


if __name__ == "__main__":
    # Synthetic PartialFC config (single device): world_size=1, rank=0,
    # sample_rate=1.0 -> num_local == num_classes, sub_weight == weight.
    batch_size = 8
    embedding_size = 128
    num_classes = 256   # num_local

    key = jax.random.PRNGKey(0)
    k_w, k_x = jax.random.split(key)

    # __init__: weight = torch.normal(0, 0.01, (num_local, embedding_size))
    weight = 0.01 * jax.random.normal(
        k_w, (num_classes, embedding_size), dtype=jnp.float32
    )
    # total_features (already all-gathered in the original; world_size=1 here)
    features = jax.random.normal(
        k_x, (batch_size, embedding_size), dtype=jnp.float32
    )

    # Reference (plain JAX): normalize + linear.
    norm = jnp.sqrt(jnp.sum(weight * weight, axis=-1, keepdims=True))
    w_norm = weight / jnp.maximum(norm, 1e-12)
    ref = features @ w_norm.T

    # f32 path (matches F.normalize + F.linear semantics tightly).
    logits = partial_fc_forward(features, weight)
    jax.block_until_ready(logits)
    assert logits.shape == (batch_size, num_classes)
    assert jnp.allclose(logits, ref, atol=1e-5, rtol=1e-5)

    # bf16-streaming path (halves the dominant C*E weight read; f32
    # sum-of-squares + f32 accumulation inside the kernel).
    logits_bf16 = partial_fc_forward(
        features.astype(jnp.bfloat16), weight.astype(jnp.bfloat16)
    )
    jax.block_until_ready(logits_bf16)
    assert logits_bf16.shape == (batch_size, num_classes)
    assert jnp.allclose(logits_bf16, ref, atol=2e-1, rtol=2e-2)

    print("KERNEL_OK")
</pallas_src>

<mosaic_0001>
module attributes {stable_mosaic.version = 11 : i64} {
  func.func @partial_fc_kernel(%arg0: i32, %arg1: i32, %arg2: memref<8x128xf32, #tpu.memory_space<vmem>>, %arg3: memref<256x128xf32, #tpu.memory_space<vmem>>, %arg4: memref<8x256xf32, #tpu.memory_space<vmem>>) attributes {dimension_semantics = [#tpu.dimension_semantics<parallel>, #tpu.dimension_semantics<parallel>], iteration_bounds = array<i64: 1, 1>, scalar_prefetch = 0 : i64, scratch_operands = 0 : i64, tpu.core_type = #tpu.core_type<tc>, window_params = [{transform_indices = @transform_0, window_bounds = array<i64: 8, 128>}, {transform_indices = @transform_1, window_bounds = array<i64: 256, 128>}, {transform_indices = @transform_2, window_bounds = array<i64: 8, 256>}]} {
    %c0 = arith.constant 0 : index
    %c0_0 = arith.constant 0 : index
    %0 = vector.load %arg3[%c0, %c0_0] : memref<256x128xf32, #tpu.memory_space<vmem>>, vector<256x128xf32>
    %1 = arith.mulf %0, %0 : vector<256x128xf32>
    %cst = arith.constant dense<0.000000e+00> : vector<256xf32>
    %2 = vector.multi_reduction <add>, %1, %cst [1] : vector<256x128xf32> to vector<256xf32>
    %3 = vector.shape_cast %2 : vector<256xf32> to vector<256x1xf32>
    %cst_1 = arith.constant 1.000000e-24 : f32
    %4 = vector.broadcast %cst_1 : f32 to vector<256x1xf32>
    %5 = arith.maximumf %3, %4 : vector<256x1xf32>
    %6 = math.rsqrt %5 : vector<256x1xf32>
    %7 = vector.broadcast %6 : vector<256x1xf32> to vector<256x128xf32>
    %8 = arith.mulf %0, %7 : vector<256x128xf32>
    %c0_2 = arith.constant 0 : index
    %c0_3 = arith.constant 0 : index
    %9 = vector.load %arg2[%c0_2, %c0_3] : memref<8x128xf32, #tpu.memory_space<vmem>>, vector<8x128xf32>
    %cst_4 = arith.constant dense<0.000000e+00> : vector<8x256xf32>
    %10 = tpu.matmul %9, %8, %cst_4 {dimension_numbers = #tpu.dot_dimension_numbers<[1], [1], [0], [0], [0, 0, 1, 0], [], []>} : vector<8x128xf32>, vector<256x128xf32>, vector<8x256xf32> -> vector<8x256xf32>
    %c0_5 = arith.constant 0 : index
    %c0_6 = arith.constant 0 : index
    %11 = vector.load %arg4[%c0_5, %c0_6] : memref<8x256xf32, #tpu.memory_space<vmem>>, vector<8x256xf32>
    tpu.vector_store %arg4[%c0_5, %c0_6], %10 {strides = array<i32>} : memref<8x256xf32, #tpu.memory_space<vmem>>, vector<8x256xf32>,
    return
  }
  func.func @transform_0(%arg0: i32, %arg1: i32) -> (i32, i32) {
    %c0_i32 = arith.constant 0 : i32
    %c0_i32_0 = arith.constant 0 : i32
    return %arg1, %c0_i32 : i32, i32
  }
  func.func @transform_1(%arg0: i32, %arg1: i32) -> (i32, i32) {
    %c0_i32 = arith.constant 0 : i32
    %c0_i32_0 = arith.constant 0 : i32
    return %arg0, %c0_i32 : i32, i32
  }
  func.func @transform_2(%arg0: i32, %arg1: i32) -> (i32, i32) {
    %c0_i32 = arith.constant 0 : i32
    return %arg1, %arg0 : i32, i32
  }
}

</mosaic_0001>

<llo_original>
// kernel: tpu_custom_call.1
$region0: #{tpu_custom_call.1}
  #allocation0 [shape = 'u32[]', space=smem, size = 0x4, offset = 0x4, fixed_abs, tag = 'smem constant byte address 0x4 - core index']
  #allocation1 [shape = 'u32[72,128]{1,0:T(1,128)}', space=vmem, size = 0x9000, scoped, tag = 'internal scratch']
  %s0 = inlined_call_operand.hbm [shape: f32[8,128], index: 0, kind: input, shape index: {}]
  %s1 = inlined_call_operand.hbm [shape: f32[256,128], index: 1, kind: input, shape index: {}]
  %s2 = inlined_call_operand.hbm [shape: f32[8,256], index: 2, kind: output, shape index: {}]
  %s3 = sld [smem:[#allocation0]]
  $region26: #{tpu_custom_call.1} parent=0
    _
  %s5 = ssub.s32 1, %s3
  %s6 = scalar_select 0, %s5, %s3
  $region1: #{tpu_custom_call.1} parent=0
    #allocation2 [shape = 'u8[4096]{0}', space=vmem, size = 0x1000, scoped, tag = 'input window, operand 0, single buffered']
    #allocation3 [shape = 's32[1]{0}', space=sflag, size = 0x4, scoped, tag = 'scoped memory for tpu_custom_call.1']
    #allocation4 [shape = 's32[1]{0}', space=sflag, size = 0x4, scoped, tag = 'scoped memory for tpu_custom_call.1']
    #allocation5 [shape = 'u8[131072]{0}', space=vmem, size = 0x20000, scoped, tag = 'input window, operand 1, single buffered']
    #allocation6 [shape = 's32[1]{0}', space=sflag, size = 0x4, scoped, tag = 'scoped memory for tpu_custom_call.1']
    #allocation7 [shape = 'u8[8192]{0}', space=vmem, size = 0x2000, scoped, tag = 'output window, operand 0, single buffered']
    %7 = vsyncpa [#allocation3], 0
    %8 = vsyncpa [#allocation6], 0
    %9 = vsyncpa [#allocation4], 0
    // Predicated region
    $region2: #{tpu_custom_call.1} parent=1 // pred_check
      _
    $region3: #{tpu_custom_call.1} parent=1 // pred_check_branch
      %11 = sbr.rel (0) target = $region5
    $region4: #{tpu_custom_call.1} parent=1 // pred_region
      %13 = vsyncadd [#allocation3], 0
      %s15 = sshll.u32 %s0, 4
      %s16 = int_to_ptr.hbm [resolvable:$true] %s15
      %s17 = sshll.u32 [#allocation2], 4
      %s18 = int_to_ptr.vmem [resolvable:$true] %s17
      %20 = dma.hbm_to_vmem [thread:$0]  %s16, 128, %s18, [#allocation3]
    $region5: #{tpu_custom_call.1} parent=1 // pred_fallthru
      _
    // Predicated region
    $region6: #{tpu_custom_call.1} parent=1 // pred_check
      _
    $region7: #{tpu_custom_call.1} parent=1 // pred_check_branch
      %22 = sbr.rel (0) target = $region9
    $region8: #{tpu_custom_call.1} parent=1 // pred_region
      %24 = vsyncadd [#allocation6], 0
      %s25 = sshll.u32 %s1, 4
      %s26 = int_to_ptr.hbm [resolvable:$true] %s25
      %s27 = sshll.u32 [#allocation5], 4
      %s28 = int_to_ptr.vmem [resolvable:$true] %s27
      %33 = dma.hbm_to_vmem [thread:$0]  %s26, 4096, %s28, [#allocation6], 128, 128, 8
    $region9: #{tpu_custom_call.1} parent=1 // pred_fallthru
      _
    // Predicated region
    $region10: #{tpu_custom_call.1} parent=1 // pred_check
      _
    $region11: #{tpu_custom_call.1} parent=1 // pred_check_branch
      %35 = sbr.rel (0) target = $region13
    $region12: #{tpu_custom_call.1} parent=1 // pred_region
      %37 = dma.done [#allocation3], 128
    $region13: #{tpu_custom_call.1} parent=1 // pred_fallthru
      _
    // Predicated region
    $region14: #{tpu_custom_call.1} parent=1 // pred_check
      _
    $region15: #{tpu_custom_call.1} parent=1 // pred_check_branch
      %39 = sbr.rel (0) target = $region17
    $region16: #{tpu_custom_call.1} parent=1 // pred_region
      %41 = dma.done [#allocation6], 4096
    $region17: #{tpu_custom_call.1} parent=1 // pred_fallthru
      _
    %v42 = vld [vmem:[#allocation5] sm:$0xff]
    %v43 = vld [vmem:[#allocation5 + $0x8] sm:$0xff]
    %v44 = vld [vmem:[#allocation5 + $0x10] sm:$0xff]
    %v45 = vld [vmem:[#allocation5 + $0x18] sm:$0xff]
    %v46 = vld [vmem:[#allocation5 + $0x20] sm:$0xff]
    %v47 = vld [vmem:[#allocation5 + $0x28] sm:$0xff]
    %v48 = vld [vmem:[#allocation5 + $0x30] sm:$0xff]
    %v49 = vld [vmem:[#allocation5 + $0x38] sm:$0xff]
    %v50 = vld [vmem:[#allocation5 + $0x40] sm:$0xff]
    %v51 = vld [vmem:[#allocation5 + $0x48] sm:$0xff]
    %v52 = vld [vmem:[#allocation5 + $0x50] sm:$0xff]
    %v53 = vld [vmem:[#allocation5 + $0x58] sm:$0xff]
    %v54 = vld [vmem:[#allocation5 + $0x60] sm:$0xff]
    %v55 = vld [vmem:[#allocation5 + $0x68] sm:$0xff]
    %v56 = vld [vmem:[#allocation5 + $0x70] sm:$0xff]
    %v57 = vld [vmem:[#allocation5 + $0x78] sm:$0xff]
    %v58 = vld [vmem:[#allocation5 + $0x80] sm:$0xff]
    %v59 = vld [vmem:[#allocation5 + $0x88] sm:$0xff]
    %v60 = vld [vmem:[#allocation5 + $0x90] sm:$0xff]
    %v61 = vld [vmem:[#allocation5 + $0x98] sm:$0xff]
    %v62 = vld [vmem:[#allocation5 + $0xa0] sm:$0xff]
    %v63 = vld [vmem:[#allocation5 + $0xa8] sm:$0xff]
    %v64 = vld [vmem:[#allocation5 + $0xb0] sm:$0xff]
    %v65 = vld [vmem:[#allocation5 + $0xb8] sm:$0xff]
    %v66 = vld [vmem:[#allocation5 + $0xc0] sm:$0xff]
    %v67 = vld [vmem:[#allocation5 + $0xc8] sm:$0xff]
    %v68 = vld [vmem:[#allocation5 + $0xd0] sm:$0xff]
    %v69 = vld [vmem:[#allocation5 + $0xd8] sm:$0xff]
    %v70 = vld [vmem:[#allocation5 + $0xe0] sm:$0xff]
    %v71 = vld [vmem:[#allocation5 + $0xe8] sm:$0xff]
    %v72 = vld [vmem:[#allocation5 + $0xf0] sm:$0xff]
    %v73 = vld [vmem:[#allocation5 + $0xf8] sm:$0xff]
    %v74 = vmul.f32 %v42, %v42
    %v75 = vmul.f32 %v43, %v43
    %v76 = vmul.f32 %v44, %v44
    %v77 = vmul.f32 %v45, %v45
    %v78 = vmul.f32 %v46, %v46
    %v79 = vmul.f32 %v47, %v47
    %v80 = vmul.f32 %v48, %v48
    %v81 = vmul.f32 %v49, %v49
    %v82 = vmul.f32 %v50, %v50
    %v83 = vmul.f32 %v51, %v51
    %v84 = vmul.f32 %v52, %v52
    %v85 = vmul.f32 %v53, %v53
    %v86 = vmul.f32 %v54, %v54
    %v87 = vmul.f32 %v55, %v55
    %v88 = vmul.f32 %v56, %v56
    %v89 = vmul.f32 %v57, %v57
    %v90 = vmul.f32 %v58, %v58
    %v91 = vmul.f32 %v59, %v59
    %v92 = vmul.f32 %v60, %v60
    %v93 = vmul.f32 %v61, %v61
    %v94 = vmul.f32 %v62, %v62
    %v95 = vmul.f32 %v63, %v63
    %v96 = vmul.f32 %v64, %v64
    %v97 = vmul.f32 %v65, %v65
    %v98 = vmul.f32 %v66, %v66
    %v99 = vmul.f32 %v67, %v67
    %v100 = vmul.f32 %v68, %v68
    %v101 = vmul.f32 %v69, %v69
    %v102 = vmul.f32 %v70, %v70
    %v103 = vmul.f32 %v71, %v71
    %v104 = vmul.f32 %v72, %v72
    %v105 = vmul.f32 %v73, %v73
    %106 = vadd.xlane.f32.xlu0 %v74
    %v107 = vpop.xlane.xlu0 %106
    %108 = vadd.xlane.f32.xlu0 %v75
    %v109 = vpop.xlane.xlu0 %108
    %110 = vadd.xlane.f32.xlu0 %v76
    %v111 = vpop.xlane.xlu0 %110
    %112 = vadd.xlane.f32.xlu0 %v77
    %v113 = vpop.xlane.xlu0 %112
    %114 = vadd.xlane.f32.xlu0 %v78
    %v115 = vpop.xlane.xlu0 %114
    %116 = vadd.xlane.f32.xlu0 %v79
    %v117 = vpop.xlane.xlu0 %116
    %118 = vadd.xlane.f32.xlu0 %v80
    %v119 = vpop.xlane.xlu0 %118
    %120 = vadd.xlane.f32.xlu0 %v81
    %v121 = vpop.xlane.xlu0 %120
    %122 = vadd.xlane.f32.xlu0 %v82
    %v123 = vpop.xlane.xlu0 %122
    %124 = vadd.xlane.f32.xlu0 %v83
    %v125 = vpop.xlane.xlu0 %124
    %126 = vadd.xlane.f32.xlu0 %v84
    %v127 = vpop.xlane.xlu0 %126
    %128 = vadd.xlane.f32.xlu0 %v85
    %v129 = vpop.xlane.xlu0 %128
    %130 = vadd.xlane.f32.xlu0 %v86
    %v131 = vpop.xlane.xlu0 %130
    %132 = vadd.xlane.f32.xlu0 %v87
    %v133 = vpop.xlane.xlu0 %132
    %134 = vadd.xlane.f32.xlu0 %v88
    %v135 = vpop.xlane.xlu0 %134
    %136 = vadd.xlane.f32.xlu0 %v89
    %v137 = vpop.xlane.xlu0 %136
    %138 = vadd.xlane.f32.xlu0 %v90
    %v139 = vpop.xlane.xlu0 %138
    %140 = vadd.xlane.f32.xlu0 %v91
    %v141 = vpop.xlane.xlu0 %140
    %142 = vadd.xlane.f32.xlu0 %v92
    %v143 = vpop.xlane.xlu0 %142
    %144 = vadd.xlane.f32.xlu0 %v93
    %v145 = vpop.xlane.xlu0 %144
    %146 = vadd.xlane.f32.xlu0 %v94
    %v147 = vpop.xlane.xlu0 %146
    %148 = vadd.xlane.f32.xlu0 %v95
    %v149 = vpop.xlane.xlu0 %148
    %150 = vadd.xlane.f32.xlu0 %v96
    %v151 = vpop.xlane.xlu0 %150
    %152 = vadd.xlane.f32.xlu0 %v97
    %v153 = vpop.xlane.xlu0 %152
    %154 = vadd.xlane.f32.xlu0 %v98
    %v155 = vpop.xlane.xlu0 %154
    %156 = vadd.xlane.f32.xlu0 %v99
    %v157 = vpop.xlane.xlu0 %156
    %158 = vadd.xlane.f32.xlu0 %v100
    %v159 = vpop.xlane.xlu0 %158
    %160 = vadd.xlane.f32.xlu0 %v101
    %v161 = vpop.xlane.xlu0 %160
    %162 = vadd.xlane.f32.xlu0 %v102
    %v163 = vpop.xlane.xlu0 %162
    %164 = vadd.xlane.f32.xlu0 %v103
    %v165 = vpop.xlane.xlu0 %164
    %166 = vadd.xlane.f32.xlu0 %v104
    %v167 = vpop.xlane.xlu0 %166
    %168 = vadd.xlane.f32.xlu0 %v105
    %v169 = vpop.xlane.xlu0 %168
    %v170 = vmax.f32 %v107, 1e-24
    %v171 = vmax.f32 %v109, 1e-24
    %v172 = vmax.f32 %v111, 1e-24
    %v173 = vmax.f32 %v113, 1e-24
    %v174 = vmax.f32 %v115, 1e-24
    %v175 = vmax.f32 %v117, 1e-24
    %v176 = vmax.f32 %v119, 1e-24
    %v177 = vmax.f32 %v121, 1e-24
    %v178 = vmax.f32 %v123, 1e-24
    %v179 = vmax.f32 %v125, 1e-24
    %v180 = vmax.f32 %v127, 1e-24
    %v181 = vmax.f32 %v129, 1e-24
    %v182 = vmax.f32 %v131, 1e-24
    %v183 = vmax.f32 %v133, 1e-24
    %v184 = vmax.f32 %v135, 1e-24
    %v185 = vmax.f32 %v137, 1e-24
    %v186 = vmax.f32 %v139, 1e-24
    %v187 = vmax.f32 %v141, 1e-24
    %v188 = vmax.f32 %v143, 1e-24
    %v189 = vmax.f32 %v145, 1e-24
    %v190 = vmax.f32 %v147, 1e-24
    %v191 = vmax.f32 %v149, 1e-24
    %v192 = vmax.f32 %v151, 1e-24
    %v193 = vmax.f32 %v153, 1e-24
    %v194 = vmax.f32 %v155, 1e-24
    %v195 = vmax.f32 %v157, 1e-24
    %v196 = vmax.f32 %v159, 1e-24
    %v197 = vmax.f32 %v161, 1e-24
    %v198 = vmax.f32 %v163, 1e-24
    %v199 = vmax.f32 %v165, 1e-24
    %v200 = vmax.f32 %v167, 1e-24
    %v201 = vmax.f32 %v169, 1e-24
    %v202 = vrsqrt.pop %v170
    %v203 = vmul.f32 %v202, %v170
    %v204 = vmul.f32 %v203, %v202
    %v205 = vmul.f32 0.5, %v204
    %v206 = vsub.f32 1.5, %v205
    %v207 = vmul.f32 %v202, %v206
    %vm208 = vweird.f32 %v170
    %vm209 = vweird.f32 %v202
    %vm210 = vmor %vm208, %vm209
    %v211 = vsel %vm210, %v202, %v207
    %v212 = vrsqrt.pop %v171
    %v213 = vmul.f32 %v212, %v171
    %v214 = vmul.f32 %v213, %v212
    %v215 = vmul.f32 0.5, %v214
    %v216 = vsub.f32 1.5, %v215
    %v217 = vmul.f32 %v212, %v216
    %vm218 = vweird.f32 %v171
    %vm219 = vweird.f32 %v212
    %vm220 = vmor %vm218, %vm219
    %v221 = vsel %vm220, %v212, %v217
    %v222 = vrsqrt.pop %v172
    %v223 = vmul.f32 %v222, %v172
    %v224 = vmul.f32 %v223, %v222
    %v225 = vmul.f32 0.5, %v224
    %v226 = vsub.f32 1.5, %v225
    %v227 = vmul.f32 %v222, %v226
    %vm228 = vweird.f32 %v172
    %vm229 = vweird.f32 %v222
    %vm230 = vmor %vm228, %vm229
    %v231 = vsel %vm230, %v222, %v227
    %v232 = vrsqrt.pop %v173
    %v233 = vmul.f32 %v232, %v173
    %v234 = vmul.f32 %v233, %v232
    %v235 = vmul.f32 0.5, %v234
    %v236 = vsub.f32 1.5, %v235
    %v237 = vmul.f32 %v232, %v236
    %vm238 = vweird.f32 %v173
    %vm239 = vweird.f32 %v232
    %vm240 = vmor %vm238, %vm239
    %v241 = vsel %vm240, %v232, %v237
    %v242 = vrsqrt.pop %v174
    %v243 = vmul.f32 %v242, %v174
    %v244 = vmul.f32 %v243, %v242
    %v245 = vmul.f32 0.5, %v244
    %v246 = vsub.f32 1.5, %v245
    %v247 = vmul.f32 %v242, %v246
    %vm248 = vweird.f32 %v174
    %vm249 = vweird.f32 %v242
    %vm250 = vmor %vm248, %vm249
    %v251 = vsel %vm250, %v242, %v247
    %v252 = vrsqrt.pop %v175
    %v253 = vmul.f32 %v252, %v175
    %v254 = vmul.f32 %v253, %v252
    %v255 = vmul.f32 0.5, %v254
    %v256 = vsub.f32 1.5, %v255
    %v257 = vmul.f32 %v252, %v256
    %vm258 = vweird.f32 %v175
    %vm259 = vweird.f32 %v252
    %vm260 = vmor %vm258, %vm259
    %v261 = vsel %vm260, %v252, %v257
    %v262 = vrsqrt.pop %v176
    %v263 = vmul.f32 %v262, %v176
    %v264 = vmul.f32 %v263, %v262
    %v265 = vmul.f32 0.5, %v264
    %v266 = vsub.f32 1.5, %v265
    %v267 = vmul.f32 %v262, %v266
    %vm268 = vweird.f32 %v176
    %vm269 = vweird.f32 %v262
    %vm270 = vmor %vm268, %vm269
    %v271 = vsel %vm270, %v262, %v267
    %v272 = vrsqrt.pop %v177
    %v273 = vmul.f32 %v272, %v177
    %v274 = vmul.f32 %v273, %v272
    %v275 = vmul.f32 0.5, %v274
    %v276 = vsub.f32 1.5, %v275
    %v277 = vmul.f32 %v272, %v276
    %vm278 = vweird.f32 %v177
    %vm279 = vweird.f32 %v272
    %vm280 = vmor %vm278, %vm279
    %v281 = vsel %vm280, %v272, %v277
    %v282 = vrsqrt.pop %v178
    %v283 = vmul.f32 %v282, %v178
    %v284 = vmul.f32 %v283, %v282
    %v285 = vmul.f32 0.5, %v284
    %v286 = vsub.f32 1.5, %v285
    %v287 = vmul.f32 %v282, %v286
    %vm288 = vweird.f32 %v178
    %vm289 = vweird.f32 %v282
    %vm290 = vmor %vm288, %vm289
    %v291 = vsel %vm290, %v282, %v287
    %v292 = vrsqrt.pop %v179
    %v293 = vmul.f32 %v292, %v179
    %v294 = vmul.f32 %v293, %v292
    %v295 = vmul.f32 0.5, %v294
    %v296 = vsub.f32 1.5, %v295
    %v297 = vmul.f32 %v292, %v296
    %vm298 = vweird.f32 %v179
    %vm299 = vweird.f32 %v292
    %vm300 = vmor %vm298, %vm299
    %v301 = vsel %vm300, %v292, %v297
    %v302 = vrsqrt.pop %v180
    %v303 = vmul.f32 %v302, %v180
    %v304 = vmul.f32 %v303, %v302
    %v305 = vmul.f32 0.5, %v304
    %v306 = vsub.f32 1.5, %v305
    %v307 = vmul.f32 %v302, %v306
    %vm308 = vweird.f32 %v180
    %vm309 = vweird.f32 %v302
    %vm310 = vmor %vm308, %vm309
    %v311 = vsel %vm310, %v302, %v307
    %v312 = vrsqrt.pop %v181
    %v313 = vmul.f32 %v312, %v181
    %v314 = vmul.f32 %v313, %v312
    %v315 = vmul.f32 0.5, %v314
    %v316 = vsub.f32 1.5, %v315
    %v317 = vmul.f32 %v312, %v316
    %vm318 = vweird.f32 %v181
    %vm319 = vweird.f32 %v312
    %vm320 = vmor %vm318, %vm319
    %v321 = vsel %vm320, %v312, %v317
    %v322 = vrsqrt.pop %v182
    %v323 = vmul.f32 %v322, %v182
    %v324 = vmul.f32 %v323, %v322
    %v325 = vmul.f32 0.5, %v324
    %v326 = vsub.f32 1.5, %v325
    %v327 = vmul.f32 %v322, %v326
    %vm328 = vweird.f32 %v182
    %vm329 = vweird.f32 %v322
    %vm330 = vmor %vm328, %vm329
    %v331 = vsel %vm330, %v322, %v327
    %v332 = vrsqrt.pop %v183
    %v333 = vmul.f32 %v332, %v183
    %v334 = vmul.f32 %v333, %v332
    %v335 = vmul.f32 0.5, %v334
    %v336 = vsub.f32 1.5, %v335
    %v337 = vmul.f32 %v332, %v336
    %vm338 = vweird.f32 %v183
    %vm339 = vweird.f32 %v332
    %vm340 = vmor %vm338, %vm339
    %v341 = vsel %vm340, %v332, %v337
    %v342 = vrsqrt.pop %v184
    %v343 = vmul.f32 %v342, %v184
    %v344 = vmul.f32 %v343, %v342
    %v345 = vmul.f32 0.5, %v344
    %v346 = vsub.f32 1.5, %v345
    %v347 = vmul.f32 %v342, %v346
    %vm348 = vweird.f32 %v184
    %vm349 = vweird.f32 %v342
    %vm350 = vmor %vm348, %vm349
    %v351 = vsel %vm350, %v342, %v347
    %v352 = vrsqrt.pop %v185
    %v353 = vmul.f32 %v352, %v185
    %v354 = vmul.f32 %v353, %v352
    %v355 = vmul.f32 0.5, %v354
    %v356 = vsub.f32 1.5, %v355
    %v357 = vmul.f32 %v352, %v356
    %vm358 = vweird.f32 %v185
    %vm359 = vweird.f32 %v352
    %vm360 = vmor %vm358, %vm359
    %v361 = vsel %vm360, %v352, %v357
    %v362 = vrsqrt.pop %v186
    %v363 = vmul.f32 %v362, %v186
    %v364 = vmul.f32 %v363, %v362
    %v365 = vmul.f32 0.5, %v364
    %v366 = vsub.f32 1.5, %v365
    %v367 = vmul.f32 %v362, %v366
    %vm368 = vweird.f32 %v186
    %vm369 = vweird.f32 %v362
    %vm370 = vmor %vm368, %vm369
    %v371 = vsel %vm370, %v362, %v367
    %v372 = vrsqrt.pop %v187
    %v373 = vmul.f32 %v372, %v187
    %v374 = vmul.f32 %v373, %v372
    %v375 = vmul.f32 0.5, %v374
    %v376 = vsub.f32 1.5, %v375
    %v377 = vmul.f32 %v372, %v376
    %vm378 = vweird.f32 %v187
    %vm379 = vweird.f32 %v372
    %vm380 = vmor %vm378, %vm379
    %v381 = vsel %vm380, %v372, %v377
    %v382 = vrsqrt.pop %v188
    %v383 = vmul.f32 %v382, %v188
    %v384 = vmul.f32 %v383, %v382
    %v385 = vmul.f32 0.5, %v384
    %v386 = vsub.f32 1.5, %v385
    %v387 = vmul.f32 %v382, %v386
    %vm388 = vweird.f32 %v188
    %vm389 = vweird.f32 %v382
    %vm390 = vmor %vm388, %vm389
    %v391 = vsel %vm390, %v382, %v387
    %v392 = vrsqrt.pop %v189
    %v393 = vmul.f32 %v392, %v189
    %v394 = vmul.f32 %v393, %v392
    %v395 = vmul.f32 0.5, %v394
    %v396 = vsub.f32 1.5, %v395
    %v397 = vmul.f32 %v392, %v396
    %vm398 = vweird.f32 %v189
    %vm399 = vweird.f32 %v392
    %vm400 = vmor %vm398, %vm399
    %v401 = vsel %vm400, %v392, %v397
    %v402 = vrsqrt.pop %v190
    %v403 = vmul.f32 %v402, %v190
    %v404 = vmul.f32 %v403, %v402
    %v405 = vmul.f32 0.5, %v404
    %v406 = vsub.f32 1.5, %v405
    %v407 = vmul.f32 %v402, %v406
    %vm408 = vweird.f32 %v190
    %vm409 = vweird.f32 %v402
    %vm410 = vmor %vm408, %vm409
    %v411 = vsel %vm410, %v402, %v407
    %v412 = vrsqrt.pop %v191
    %v413 = vmul.f32 %v412, %v191
    %v414 = vmul.f32 %v413, %v412
    %v415 = vmul.f32 0.5, %v414
    %v416 = vsub.f32 1.5, %v415
    %v417 = vmul.f32 %v412, %v416
    %vm418 = vweird.f32 %v191
    %vm419 = vweird.f32 %v412
    %vm420 = vmor %vm418, %vm419
    %v421 = vsel %vm420, %v412, %v417
    %v422 = vrsqrt.pop %v192
    %v423 = vmul.f32 %v422, %v192
    %v424 = vmul.f32 %v423, %v422
    %v425 = vmul.f32 0.5, %v424
    %v426 = vsub.f32 1.5, %v425
    %v427 = vmul.f32 %v422, %v426
    %vm428 = vweird.f32 %v192
    %vm429 = vweird.f32 %v422
    %vm430 = vmor %vm428, %vm429
    %v431 = vsel %vm430, %v422, %v427
    %v432 = vrsqrt.pop %v193
    %v433 = vmul.f32 %v432, %v193
    %v434 = vmul.f32 %v433, %v432
    %v435 = vmul.f32 0.5, %v434
    %v436 = vsub.f32 1.5, %v435
    %v437 = vmul.f32 %v432, %v436
    %vm438 = vweird.f32 %v193
    %vm439 = vweird.f32 %v432
    %vm440 = vmor %vm438, %vm439
    %v441 = vsel %vm440, %v432, %v437
    %v442 = vrsqrt.pop %v194
    %v443 = vmul.f32 %v442, %v194
    %v444 = vmul.f32 %v443, %v442
    %v445 = vmul.f32 0.5, %v444
    %v446 = vsub.f32 1.5, %v445
    %v447 = vmul.f32 %v442, %v446
    %vm448 = vweird.f32 %v194
    %vm449 = vweird.f32 %v442
    %vm450 = vmor %vm448, %vm449
    %v451 = vsel %vm450, %v442, %v447
    %v452 = vrsqrt.pop %v195
    %v453 = vmul.f32 %v452, %v195
    %v454 = vmul.f32 %v453, %v452
    %v455 = vmul.f32 0.5, %v454
    %v456 = vsub.f32 1.5, %v455
    %v457 = vmul.f32 %v452, %v456
    %vm458 = vweird.f32 %v195
    %vm459 = vweird.f32 %v452
    %vm460 = vmor %vm458, %vm459
    %v461 = vsel %vm460, %v452, %v457
    %v462 = vrsqrt.pop %v196
    %v463 = vmul.f32 %v462, %v196
    %v464 = vmul.f32 %v463, %v462
    %v465 = vmul.f32 0.5, %v464
    %v466 = vsub.f32 1.5, %v465
    %v467 = vmul.f32 %v462, %v466
    %vm468 = vweird.f32 %v196
    %vm469 = vweird.f32 %v462
    %vm470 = vmor %vm468, %vm469
    %v471 = vsel %vm470, %v462, %v467
    %v472 = vrsqrt.pop %v197
    %v473 = vmul.f32 %v472, %v197
    %v474 = vmul.f32 %v473, %v472
    %v475 = vmul.f32 0.5, %v474
    %v476 = vsub.f32 1.5, %v475
    %v477 = vmul.f32 %v472, %v476
    %vm478 = vweird.f32 %v197
    %vm479 = vweird.f32 %v472
    %vm480 = vmor %vm478, %vm479
    %v481 = vsel %vm480, %v472, %v477
    %v482 = vrsqrt.pop %v198
    %v483 = vmul.f32 %v482, %v198
    %v484 = vmul.f32 %v483, %v482
    %v485 = vmul.f32 0.5, %v484
    %v486 = vsub.f32 1.5, %v485
    %v487 = vmul.f32 %v482, %v486
    %vm488 = vweird.f32 %v198
    %vm489 = vweird.f32 %v482
    %vm490 = vmor %vm488, %vm489
    %v491 = vsel %vm490, %v482, %v487
    %v492 = vrsqrt.pop %v199
    %v493 = vmul.f32 %v492, %v199
    %v494 = vmul.f32 %v493, %v492
    %v495 = vmul.f32 0.5, %v494
    %v496 = vsub.f32 1.5, %v495
    %v497 = vmul.f32 %v492, %v496
    %vm498 = vweird.f32 %v199
    %vm499 = vweird.f32 %v492
    %vm500 = vmor %vm498, %vm499
    %v501 = vsel %vm500, %v492, %v497
    %v502 = vrsqrt.pop %v200
    %v503 = vmul.f32 %v502, %v200
    %v504 = vmul.f32 %v503, %v502
    %v505 = vmul.f32 0.5, %v504
    %v506 = vsub.f32 1.5, %v505
    %v507 = vmul.f32 %v502, %v506
    %vm508 = vweird.f32 %v200
    %vm509 = vweird.f32 %v502
    %vm510 = vmor %vm508, %vm509
    %v511 = vsel %vm510, %v502, %v507
    %v512 = vrsqrt.pop %v201
    %v513 = vmul.f32 %v512, %v201
    %v514 = vmul.f32 %v513, %v512
    %v515 = vmul.f32 0.5, %v514
    %v516 = vsub.f32 1.5, %v515
    %v517 = vmul.f32 %v512, %v516
    %vm518 = vweird.f32 %v201
    %vm519 = vweird.f32 %v512
    %vm520 = vmor %vm518, %vm519
    %v521 = vsel %vm520, %v512, %v517
    %v522 = vmul.f32 %v42, %v211
    %v523 = vmul.f32 %v43, %v221
    %v524 = vmul.f32 %v44, %v231
    %v525 = vmul.f32 %v45, %v241
    %v526 = vmul.f32 %v46, %v251
    %v527 = vmul.f32 %v47, %v261
    %v528 = vmul.f32 %v48, %v271
    %v529 = vmul.f32 %v49, %v281
    %v530 = vmul.f32 %v50, %v291
    %v531 = vmul.f32 %v51, %v301
    %v532 = vmul.f32 %v52, %v311
    %v533 = vmul.f32 %v53, %v321
    %v534 = vmul.f32 %v54, %v331
    %v535 = vmul.f32 %v55, %v341
    %v536 = vmul.f32 %v56, %v351
    %v537 = vmul.f32 %v57, %v361
    %v538 = vmul.f32 %v58, %v371
    %v539 = vmul.f32 %v59, %v381
    %v540 = vmul.f32 %v60, %v391
    %v541 = vmul.f32 %v61, %v401
    %v542 = vmul.f32 %v62, %v411
    %v543 = vmul.f32 %v63, %v421
    %v544 = vmul.f32 %v64, %v431
    %v545 = vmul.f32 %v65, %v441
    %v546 = vmul.f32 %v66, %v451
    %v547 = vmul.f32 %v67, %v461
    %v548 = vmul.f32 %v68, %v471
    %v549 = vmul.f32 %v69, %v481
    %v550 = vmul.f32 %v70, %v491
    %v551 = vmul.f32 %v71, %v501
    %v552 = vmul.f32 %v72, %v511
    %v553 = vmul.f32 %v73, %v521
    %v554 = vld [vmem:[#allocation2] sm:$0xff]
    %555 = vmatpush.xpose.msra.mxu0 %v537
    %556 = vmatpush.xpose.msra.mxu0 %v536
    %557 = vmatpush.xpose.msra.mxu0 %v535
    %558 = vmatpush.xpose.msra.mxu0 %v534
    %559 = vmatpush.xpose.msra.mxu0 %v533
    %560 = vmatpush.xpose.msra.mxu0 %v532
    %561 = vmatpush.xpose.msra.mxu0 %v531
    %562 = vmatpush.xpose.msra.mxu0 %v530
    %563 = vmatpush.xpose.msra.mxu0 %v529
    %564 = vmatpush.xpose.msra.mxu0 %v528
    %565 = vmatpush.xpose.msra.mxu0 %v527
    %566 = vmatpush.xpose.msra.mxu0 %v526
    %567 = vmatpush.xpose.msra.mxu0 %v525
    %568 = vmatpush.xpose.msra.mxu0 %v524
    %569 = vmatpush.xpose.msra.mxu0 %v523
    %570 = vmatpush.xpose.msra.mxu0 %v522
    %571 = vmatmul.f32.gmra.mxu0 %v554
    %v572 = vpop.f32.mrf.mxu0
    %v573 = vadd.f32 0.0, %v572
    %574 = vdwg.mxu0
    %575 = vmatpush.xpose.msra.mxu0 %v553
    %576 = vmatpush.xpose.msra.mxu0 %v552
    %577 = vmatpush.xpose.msra.mxu0 %v551
    %578 = vmatpush.xpose.msra.mxu0 %v550
    %579 = vmatpush.xpose.msra.mxu0 %v549
    %580 = vmatpush.xpose.msra.mxu0 %v548
    %581 = vmatpush.xpose.msra.mxu0 %v547
    %582 = vmatpush.xpose.msra.mxu0 %v546
    %583 = vmatpush.xpose.msra.mxu0 %v545
    %584 = vmatpush.xpose.msra.mxu0 %v544
    %585 = vmatpush.xpose.msra.mxu0 %v543
    %586 = vmatpush.xpose.msra.mxu0 %v542
    %587 = vmatpush.xpose.msra.mxu0 %v541
    %588 = vmatpush.xpose.msra.mxu0 %v540
    %589 = vmatpush.xpose.msra.mxu0 %v539
    %590 = vmatpush.xpose.msra.mxu0 %v538
    %591 = vmatmul.f32.gmra.mxu0 %v554
    %v592 = vpop.f32.mrf.mxu0
    %v593 = vadd.f32 0.0, %v592
    %594 = vdwg.mxu0
    %595 = vst [vmem:[#allocation7] sm:$0xff] %v573
    %596 = vst [vmem:[#allocation7 + $0x8] sm:$0xff] %v593
    // Predicated region
    $region18: #{tpu_custom_call.1} parent=1 // pred_check
      _
    $region19: #{tpu_custom_call.1} parent=1 // pred_check_branch
      %598 = sbr.rel (0) target = $region21
    $region20: #{tpu_custom_call.1} parent=1 // pred_region
      %600 = vsyncadd [#allocation4], 0
      %s602 = sshll.u32 [#allocation7], 4
      %s603 = int_to_ptr.vmem [resolvable:$true] %s602
      %s604 = sshll.u32 %s2, 4
      %s605 = int_to_ptr.hbm [resolvable:$true] %s604
      %607 = dma.vmem_to_hbm [thread:$0]  %s603, 256, %s605, [#allocation4]
    $region21: #{tpu_custom_call.1} parent=1 // pred_fallthru
      _
    // Predicated region
    $region22: #{tpu_custom_call.1} parent=1 // pred_check
      _
    $region23: #{tpu_custom_call.1} parent=1 // pred_check_branch
      %609 = sbr.rel (0) target = $region25
    $region24: #{tpu_custom_call.1} parent=1 // pred_region
      %611 = dma.done [#allocation4], 256
    $region25: #{tpu_custom_call.1} parent=1 // pred_fallthru
      _
    %612 = vsyncpa [#allocation3], 1
    %613 = vsyncpa [#allocation6], 1
    %614 = vsyncpa [#allocation4], 1

</llo_original>
